<compile_context>
chip_gen: v6e
topology: v6e:2x2x1
jax: 0.10.0
libtpu: 0.0.40
codegen_flags: <defaults>
</compile_context>

<pallas_src>
import functools

import jax
import jax.numpy as jnp
from jax.experimental import pallas as pl
from jax.experimental.pallas import tpu as pltpu

_NEG_INF = float(-1e30)  # finite "minus infinity": avoids inf-inf NaN paths


def _head_kernel(x_ref, w1_ref, b1_ref, w2_ref, fcw_ref, fcb_ref, out_ref,
                 m_sc, l_sc, acc_sc, *, true_seq_len):
    """One (batch-tile, sequence-tile) step of attention pooling + fc.

    x_ref  : [TB, TS, H]  last_hidden_states tile (bf16)
    w1_ref : [H, ATT]     attention Linear #1 weight, bf16 (transposed vs torch)
    b1_ref : [1, ATT]     f32
    w2_ref : [1, ATT]     attention Linear #2 weight as a row (b2 dropped), f32
    fcw_ref: [H, TP]      fc weight, zero-padded to TP (lane-dense) columns, f32
    fcb_ref: [1, TP]      f32
    out_ref: [TB, TP]     resident across the sequence grid axis
    m_sc   : [TB, 1]      running max      (online softmax)
    l_sc   : [TB, 1]      running sum
    acc_sc : [TB, H]      running weighted sum of hidden states
    true_seq_len : Python int or None — mask padded tokens when not None.
    """
    TB, TS, H = x_ref.shape
    s_idx = pl.program_id(1)
    n_s = pl.num_programs(1)

    @pl.when(s_idx == 0)
    def _():
        m_sc[...] = jnp.full_like(m_sc, _NEG_INF)
        l_sc[...] = jnp.zeros_like(l_sc)
        acc_sc[...] = jnp.zeros_like(acc_sc)

    x = x_ref[...]                                             # [TB, TS, H] bf16
    x2 = x.reshape(TB * TS, H)

    # Attention Linear #1 + Tanh: bf16 operands, f32 MXU accumulation; tanh->EUP.
    h = jnp.tanh(
        jnp.dot(x2, w1_ref[...], preferred_element_type=jnp.float32)
        + b1_ref[...]
    )                                                          # [TB*TS, ATT] f32
    h3 = h.reshape(TB, TS, h.shape[-1])                        # [TB, TS, ATT]

    # Attention Linear #2 (output width 1): VPU multiply + lane reduction
    # instead of an MXU matmul. b2 is a uniform shift and cancels in softmax.
    scores = jnp.sum(h3 * w2_ref[...], axis=-1)                # [TB, TS] f32

    # Mask padded tokens (only traced in when the wrapper actually padded S).
    if true_seq_len is not None:
        pos = s_idx * TS + jax.lax.broadcasted_iota(jnp.int32, scores.shape, 1)
        scores = jnp.where(pos < true_seq_len, scores, _NEG_INF)

    # Online softmax over the sequence (across sequence tiles).
    m_new = jnp.maximum(m_sc[...], jnp.max(scores, axis=-1, keepdims=True))
    alpha = jnp.exp(m_sc[...] - m_new)                          # [TB, 1]
    p = jnp.exp(scores - m_new)                                 # [TB, TS] f32
    l_sc[...] = alpha * l_sc[...] + jnp.sum(p, axis=-1, keepdims=True)
    # Weighted sum of hidden states: VPU multiply + sublane reduce over TS
    # (keeps the softmax weights in f32; no MXU matvec with 1/8 row occupancy).
    acc_sc[...] = alpha * acc_sc[...] + jnp.sum(
        p[:, :, None] * x.astype(jnp.float32), axis=1)          # [TB, H]
    m_sc[...] = m_new

    @pl.when(s_idx == n_s - 1)
    def _():
        # Finalize once per batch tile: normalize and apply fc.
        inv_l = pl.reciprocal(l_sc[...], approx=True)           # EUP, once/tile
        feat = acc_sc[...] * inv_l                              # [TB, H] f32
        out_ref[...] = (
            jnp.dot(feat, fcw_ref[...], preferred_element_type=jnp.float32)
            + fcb_ref[...]
        ).astype(out_ref.dtype)


def _physical_vmem_bytes():
    """Per-core physical VMEM, with a conservative (v7x-sized) fallback."""
    try:
        info = pltpu.get_tpu_info()
        cap = getattr(info, "vmem_capacity_bytes", None)
        if cap:
            return int(cap)
    except Exception:
        pass
    return 64 << 20


def _vmem_estimate(TB, TS, H, ATT, TP):
    """Rough VMEM footprint for one grid step (bytes)."""
    db = 2                                      # BlockSpec double-buffering
    x_tiles = db * TB * TS * H * 2              # bf16 x tile
    weights = db * (H * ATT * 2                 # w1 (bf16)
                    + ATT * 4 + ATT * 4         # b1, w2 row (f32)
                    + H * TP * 4 + TP * 4)      # fc_w, fc_b (f32, padded)
    out_tiles = db * TB * TP * 4
    scratch = TB * (2 + H) * 4
    temps = (TB * TS * ATT * 4 * 2              # x@w1 / tanh f32 intermediates
             + TB * TS * H * 4                  # p[:, :, None] * x f32 product
             + TB * TS * 4 * 4)                 # scores / p / mask temps
    return x_tiles + weights + out_tiles + scratch + temps


def custom_model_head(x, w1, b1, w2, b2, fc_w, fc_b, *, tb=None, ts=None):
    """Attention pooling + fc.  b2 is accepted for API parity but unused
    (a uniform pre-softmax shift is a mathematical no-op)."""
    del b2
    B, S, H = x.shape
    ATT = w1.shape[1]
    T = fc_w.shape[1]
    TP = 128 * pl.cdiv(T, 128)                  # lane-dense output width

    # ---- batch tile: 8-sublane aligned; nb >= 2 whenever B > 8 (megacore) ----
    if tb is not None:
        TB = tb
    elif B % 8 == 0 and B > 8:
        TB = 8
    else:
        TB = B                                  # full dim satisfies block rule
    nb = B // TB

    # ---- generation-aware VMEM budget ----
    phys = _physical_vmem_bytes()
    cap = max(phys - (12 << 20), 16 << 20)      # headroom for Mosaic scratch

    # ---- sequence tile: largest candidate that fits the VMEM budget ----
    if ts is not None:
        TS = ts
    else:
        s8 = 8 * pl.cdiv(S, 8)
        TS = 8
        for cand in (2048, 1024, 512, 256, 128, 64, 32, 16, 8):
            if cand <= s8 and _vmem_estimate(TB, cand, H, ATT, TP) <= 0.85 * cap:
                TS = cand
                break
    S_pad = TS * pl.cdiv(S, TS)
    n_s = S_pad // TS

    est = _vmem_estimate(TB, TS, H, ATT, TP)
    vmem_limit = int(min(cap, max(32 << 20, int(1.3 * est))))

    # ---- wrapper-side layout / dtype plumbing (cheap, one-time) ----
    x_in = x.astype(jnp.bfloat16)               # halve the big HBM stream
    if S_pad != S:
        x_in = jnp.pad(x_in, ((0, 0), (0, S_pad - S), (0, 0)))
    w1_in = w1.astype(jnp.bfloat16)
    b1_in = b1.reshape(1, ATT).astype(jnp.float32)
    w2_row = w2.reshape(1, ATT).astype(jnp.float32)
    fc_w_p = jnp.zeros((H, TP), jnp.float32).at[:, :T].set(
        fc_w.astype(jnp.float32))
    fc_b_p = jnp.zeros((1, TP), jnp.float32).at[:, :T].set(
        fc_b.reshape(1, T).astype(jnp.float32))

    kernel = functools.partial(
        _head_kernel, true_seq_len=(S if S_pad != S else None))

    cost = pl.CostEstimate(
        flops=(2 * B * S_pad * H * ATT          # x @ w1
               + 2 * B * S_pad * ATT            # score reduction
               + 4 * B * S_pad * H              # weighted sum
               + 2 * B * H * TP),               # fc
        transcendentals=B * S_pad * ATT + B * S_pad,   # tanh + exp
        bytes_accessed=(B * S_pad * H * 2 + H * ATT * 2 + 2 * ATT * 4
                        + H * TP * 4 + TP * 4 + B * TP * 4),
    )

    grid_spec = pltpu.PrefetchScalarGridSpec(
        num_scalar_prefetch=0,
        grid=(nb, n_s),
        in_specs=[
            pl.BlockSpec((TB, TS, H), lambda b, s: (b, s, 0)),   # x (bf16)
            pl.BlockSpec((H, ATT),   lambda b, s: (0, 0)),       # w1 (bf16)
            pl.BlockSpec((1, ATT),   lambda b, s: (0, 0)),       # b1
            pl.BlockSpec((1, ATT),   lambda b, s: (0, 0)),       # w2 row
            pl.BlockSpec((H, TP),    lambda b, s: (0, 0)),       # fc_w padded
            pl.BlockSpec((1, TP),    lambda b, s: (0, 0)),       # fc_b padded
        ],
        out_specs=pl.BlockSpec((TB, TP), lambda b, s: (b, 0)),   # resident over s
        scratch_shapes=[
            pltpu.VMEM((TB, 1), jnp.float32),   # running max
            pltpu.VMEM((TB, 1), jnp.float32),   # running sum
            pltpu.VMEM((TB, H), jnp.float32),   # weighted-sum accumulator
        ],
    )

    out_padded = pl.pallas_call(
        kernel,
        out_shape=jax.ShapeDtypeStruct((B, TP), jnp.float32),
        grid_spec=grid_spec,
        compiler_params=pltpu.CompilerParams(
            dimension_semantics=("parallel", "arbitrary"),
            vmem_limit_bytes=vmem_limit,
        ),
        cost_estimate=cost,
    )(x_in, w1_in, b1_in, w2_row, fc_w_p, fc_b_p)

    return out_padded[:, :T]


def reference_head(x, w1, b1, w2, b2, fc_w, fc_b):
    h = jnp.tanh(x @ w1 + b1)                        # [B, S, ATT]
    scores = h @ w2 + b2                             # [B, S, 1]
    w = jax.nn.softmax(scores, axis=1)               # [B, S, 1]
    feat = jnp.sum(w * x, axis=1)                    # [B, H]
    return feat @ fc_w + fc_b


if __name__ == "__main__":
    # Small shapes consistent with the forward pass.
    B, S, H = 8, 32, 32         # batch, seq, hidden_size
    ATT = 512                   # attention hidden (fixed in the module)
    T = 4                       # cfg.target_size
    INIT_RANGE = 0.02           # config.initializer_range

    key = jax.random.PRNGKey(0)
    k_x, k_w1, k_w2, k_fc = jax.random.split(key, 4)

    # "last_hidden_states" stand-in for the backbone output.
    x = jax.random.normal(k_x, (B, S, H), dtype=jnp.float32)

    # Parameters: normal(0, initializer_range) weights, zero biases
    # (matches _init_weights). Stored transposed (in_features, out_features).
    w1 = INIT_RANGE * jax.random.normal(k_w1, (H, ATT), dtype=jnp.float32)
    b1 = jnp.zeros((1, ATT), dtype=jnp.float32)
    w2 = INIT_RANGE * jax.random.normal(k_w2, (ATT, 1), dtype=jnp.float32)
    b2 = jnp.zeros((1, 1), dtype=jnp.float32)
    fc_w = INIT_RANGE * jax.random.normal(k_fc, (H, T), dtype=jnp.float32)
    fc_b = jnp.zeros((1, T), dtype=jnp.float32)

    # The kernel streams x / w1 in bf16, so compare against a reference fed
    # the same bf16-quantized values (remaining diff = accumulation order,
    # EUP tanh/exp and the approx reciprocal — well inside 2e-3).
    x_q = x.astype(jnp.bfloat16).astype(jnp.float32)
    w1_q = w1.astype(jnp.bfloat16).astype(jnp.float32)

    # Case 1: S divisible by the tile; ts=8 forces 4 sequence tiles so the
    # online-softmax accumulation across tiles is exercised.
    out = custom_model_head(x, w1, b1, w2, b2, fc_w, fc_b, ts=8)
    out = jax.block_until_ready(out)
    ref = reference_head(x_q, w1_q, b1, w2, b2, fc_w, fc_b)
    assert out.shape == (B, T)
    assert jnp.allclose(out, ref, atol=2e-3, rtol=2e-3), (
        float(jnp.max(jnp.abs(out - ref))))

    # Case 2: ragged S (wrapper pads to a tile multiple and masks the scores).
    S2 = 30
    x2 = x[:, :S2]
    out2 = custom_model_head(x2, w1, b1, w2, b2, fc_w, fc_b, ts=8)
    out2 = jax.block_until_ready(out2)
    ref2 = reference_head(x_q[:, :S2], w1_q, b1, w2, b2, fc_w, fc_b)
    assert out2.shape == (B, T)
    assert jnp.allclose(out2, ref2, atol=2e-3, rtol=2e-3), (
        float(jnp.max(jnp.abs(out2 - ref2))))

    print("KERNEL_OK")
</pallas_src>

<mosaic_0001>
module attributes {stable_mosaic.version = 11 : i64} {
  func.func @_head_kernel(%arg0: i32, %arg1: i32, %arg2: memref<8x8x32xbf16, #tpu.memory_space<vmem>>, %arg3: memref<32x512xbf16, #tpu.memory_space<vmem>>, %arg4: memref<1x512xf32, #tpu.memory_space<vmem>>, %arg5: memref<1x512xf32, #tpu.memory_space<vmem>>, %arg6: memref<32x128xf32, #tpu.memory_space<vmem>>, %arg7: memref<1x128xf32, #tpu.memory_space<vmem>>, %arg8: memref<8x128xf32, #tpu.memory_space<vmem>>, %arg9: memref<8x1xf32, #tpu.memory_space<vmem>>, %arg10: memref<8x1xf32, #tpu.memory_space<vmem>>, %arg11: memref<8x32xf32, #tpu.memory_space<vmem>>) attributes {dimension_semantics = [#tpu.dimension_semantics<parallel>, #tpu.dimension_semantics<arbitrary>], iteration_bounds = array<i64: 1, 4>, scalar_prefetch = 0 : i64, scratch_operands = 3 : i64, tpu.core_type = #tpu.core_type<tc>, window_params = [{transform_indices = @transform_0, window_bounds = array<i64: 8, 8, 32>}, {pipeline_mode = #tpu.pipeline_mode<synchronous>, transform_indices = @transform_1, window_bounds = array<i64: 32, 512>}, {pipeline_mode = #tpu.pipeline_mode<synchronous>, transform_indices = @transform_2, window_bounds = array<i64: 1, 512>}, {pipeline_mode = #tpu.pipeline_mode<synchronous>, transform_indices = @transform_3, window_bounds = array<i64: 1, 512>}, {pipeline_mode = #tpu.pipeline_mode<synchronous>, transform_indices = @transform_4, window_bounds = array<i64: 32, 128>}, {pipeline_mode = #tpu.pipeline_mode<synchronous>, transform_indices = @transform_5, window_bounds = array<i64: 1, 128>}, {transform_indices = @transform_6, window_bounds = array<i64: 8, 128>}]} {
    %c0_i32 = arith.constant 0 : i32
    %0 = arith.cmpi eq, %arg1, %c0_i32 : i32
    %1 = arith.extui %0 : i1 to i32
    %c0_i32_0 = arith.constant 0 : i32
    %2 = arith.cmpi ne, %1, %c0_i32_0 : i32
    scf.if %2 {
      %cst_28 = arith.constant -1.000000e+30 : f32
      %47 = vector.broadcast %cst_28 : f32 to vector<8x1xf32>
      %c0_29 = arith.constant 0 : index
      %c0_30 = arith.constant 0 : index
      %48 = vector.load %arg9[%c0_29, %c0_30] : memref<8x1xf32, #tpu.memory_space<vmem>>, vector<8x1xf32>
      tpu.vector_store %arg9[%c0_29, %c0_30], %47 {strides = array<i32>} : memref<8x1xf32, #tpu.memory_space<vmem>>, vector<8x1xf32>,
      %cst_31 = arith.constant 0.000000e+00 : f32
      %49 = vector.broadcast %cst_31 : f32 to vector<8x1xf32>
      %c0_32 = arith.constant 0 : index
      %c0_33 = arith.constant 0 : index
      %50 = vector.load %arg10[%c0_32, %c0_33] : memref<8x1xf32, #tpu.memory_space<vmem>>, vector<8x1xf32>
      tpu.vector_store %arg10[%c0_32, %c0_33], %49 {strides = array<i32>} : memref<8x1xf32, #tpu.memory_space<vmem>>, vector<8x1xf32>,
      %cst_34 = arith.constant 0.000000e+00 : f32
      %51 = vector.broadcast %cst_34 : f32 to vector<8x32xf32>
      %c0_35 = arith.constant 0 : index
      %c0_36 = arith.constant 0 : index
      %52 = vector.load %arg11[%c0_35, %c0_36] : memref<8x32xf32, #tpu.memory_space<vmem>>, vector<8x32xf32>
      tpu.vector_store %arg11[%c0_35, %c0_36], %51 {strides = array<i32>} : memref<8x32xf32, #tpu.memory_space<vmem>>, vector<8x32xf32>,
    } else {
    }
    %c0 = arith.constant 0 : index
    %c0_1 = arith.constant 0 : index
    %c0_2 = arith.constant 0 : index
    %3 = vector.load %arg2[%c0, %c0_1, %c0_2] : memref<8x8x32xbf16, #tpu.memory_space<vmem>>, vector<8x8x32xbf16>
    %4 = vector.shape_cast %3 : vector<8x8x32xbf16> to vector<64x32xbf16>
    %c0_3 = arith.constant 0 : index
    %c0_4 = arith.constant 0 : index
    %5 = vector.load %arg3[%c0_3, %c0_4] : memref<32x512xbf16, #tpu.memory_space<vmem>>, vector<32x512xbf16>
    %cst = arith.constant dense<0.000000e+00> : vector<64x512xf32>
    %6 = tpu.matmul %4, %5, %cst {dimension_numbers = #tpu.dot_dimension_numbers<[1], [0], [0], [1], [0, 0, 1, 1], [], []>} : vector<64x32xbf16>, vector<32x512xbf16>, vector<64x512xf32> -> vector<64x512xf32>
    %c0_5 = arith.constant 0 : index
    %c0_6 = arith.constant 0 : index
    %7 = vector.load %arg4[%c0_5, %c0_6] : memref<1x512xf32, #tpu.memory_space<vmem>>, vector<1x512xf32>
    %8 = vector.broadcast %7 : vector<1x512xf32> to vector<64x512xf32>
    %9 = arith.addf %6, %8 : vector<64x512xf32>
    %10 = math.tanh %9 : vector<64x512xf32>
    %11 = vector.shape_cast %10 : vector<64x512xf32> to vector<8x8x512xf32>
    %c0_7 = arith.constant 0 : index
    %c0_8 = arith.constant 0 : index
    %12 = vector.load %arg5[%c0_7, %c0_8] : memref<1x512xf32, #tpu.memory_space<vmem>>, vector<1x512xf32>
    %13 = vector.shape_cast %12 : vector<1x512xf32> to vector<1x1x512xf32>
    %14 = vector.broadcast %13 : vector<1x1x512xf32> to vector<8x8x512xf32>
    %15 = arith.mulf %11, %14 : vector<8x8x512xf32>
    %cst_9 = arith.constant dense<0.000000e+00> : vector<8x8xf32>
    %16 = vector.multi_reduction <add>, %15, %cst_9 [2] : vector<8x8x512xf32> to vector<8x8xf32>
    %c0_10 = arith.constant 0 : index
    %c0_11 = arith.constant 0 : index
    %17 = vector.load %arg9[%c0_10, %c0_11] : memref<8x1xf32, #tpu.memory_space<vmem>>, vector<8x1xf32>
    %cst_12 = arith.constant dense<0xFF800000> : vector<8xf32>
    %18 = vector.multi_reduction <maximumf>, %16, %cst_12 [1] : vector<8x8xf32> to vector<8xf32>
    %19 = vector.shape_cast %18 : vector<8xf32> to vector<8x1xf32>
    %20 = arith.maximumf %17, %19 : vector<8x1xf32>
    %c0_13 = arith.constant 0 : index
    %c0_14 = arith.constant 0 : index
    %21 = vector.load %arg9[%c0_13, %c0_14] : memref<8x1xf32, #tpu.memory_space<vmem>>, vector<8x1xf32>
    %22 = arith.subf %21, %20 : vector<8x1xf32>
    %23 = math.exp %22 : vector<8x1xf32>
    %24 = vector.broadcast %20 : vector<8x1xf32> to vector<8x8xf32>
    %25 = arith.subf %16, %24 : vector<8x8xf32>
    %26 = math.exp %25 : vector<8x8xf32>
    %c0_15 = arith.constant 0 : index
    %c0_16 = arith.constant 0 : index
    %27 = vector.load %arg10[%c0_15, %c0_16] : memref<8x1xf32, #tpu.memory_space<vmem>>, vector<8x1xf32>
    %28 = arith.mulf %23, %27 : vector<8x1xf32>
    %cst_17 = arith.constant dense<0.000000e+00> : vector<8xf32>
    %29 = vector.multi_reduction <add>, %26, %cst_17 [1] : vector<8x8xf32> to vector<8xf32>
    %30 = vector.shape_cast %29 : vector<8xf32> to vector<8x1xf32>
    %31 = arith.addf %28, %30 : vector<8x1xf32>
    %c0_18 = arith.constant 0 : index
    %c0_19 = arith.constant 0 : index
    %32 = vector.load %arg10[%c0_18, %c0_19] : memref<8x1xf32, #tpu.memory_space<vmem>>, vector<8x1xf32>
    tpu.vector_store %arg10[%c0_18, %c0_19], %31 {strides = array<i32>} : memref<8x1xf32, #tpu.memory_space<vmem>>, vector<8x1xf32>,
    %c0_20 = arith.constant 0 : index
    %c0_21 = arith.constant 0 : index
    %33 = vector.load %arg11[%c0_20, %c0_21] : memref<8x32xf32, #tpu.memory_space<vmem>>, vector<8x32xf32>
    %34 = vector.broadcast %23 : vector<8x1xf32> to vector<8x32xf32>
    %35 = arith.mulf %34, %33 : vector<8x32xf32>
    %36 = vector.shape_cast %26 : vector<8x8xf32> to vector<8x8x1xf32>
    %37 = arith.extf %3 : vector<8x8x32xbf16> to vector<8x8x32xf32>
    %38 = vector.broadcast %36 : vector<8x8x1xf32> to vector<8x8x32xf32>
    %39 = arith.mulf %38, %37 : vector<8x8x32xf32>
    %cst_22 = arith.constant dense<0.000000e+00> : vector<8x32xf32>
    %40 = vector.multi_reduction <add>, %39, %cst_22 [1] : vector<8x8x32xf32> to vector<8x32xf32>
    %41 = arith.addf %35, %40 : vector<8x32xf32>
    %c0_23 = arith.constant 0 : index
    %c0_24 = arith.constant 0 : index
    %42 = vector.load %arg11[%c0_23, %c0_24] : memref<8x32xf32, #tpu.memory_space<vmem>>, vector<8x32xf32>
    tpu.vector_store %arg11[%c0_23, %c0_24], %41 {strides = array<i32>} : memref<8x32xf32, #tpu.memory_space<vmem>>, vector<8x32xf32>,
    %c0_25 = arith.constant 0 : index
    %c0_26 = arith.constant 0 : index
    %43 = vector.load %arg9[%c0_25, %c0_26] : memref<8x1xf32, #tpu.memory_space<vmem>>, vector<8x1xf32>
    tpu.vector_store %arg9[%c0_25, %c0_26], %20 {strides = array<i32>} : memref<8x1xf32, #tpu.memory_space<vmem>>, vector<8x1xf32>,
    %c3_i32 = arith.constant 3 : i32
    %44 = arith.cmpi eq, %arg1, %c3_i32 : i32
    %45 = arith.extui %44 : i1 to i32
    %c0_i32_27 = arith.constant 0 : i32
    %46 = arith.cmpi ne, %45, %c0_i32_27 : i32
    scf.if %46 {
      %c0_28 = arith.constant 0 : index
      %c0_29 = arith.constant 0 : index
      %47 = vector.load %arg10[%c0_28, %c0_29] : memref<8x1xf32, #tpu.memory_space<vmem>>, vector<8x1xf32>
      %48 = tpu.reciprocal %47 {approx = true} : vector<8x1xf32> -> vector<8x1xf32>
      %c0_30 = arith.constant 0 : index
      %c0_31 = arith.constant 0 : index
      %49 = vector.load %arg11[%c0_30, %c0_31] : memref<8x32xf32, #tpu.memory_space<vmem>>, vector<8x32xf32>
      %50 = vector.broadcast %48 : vector<8x1xf32> to vector<8x32xf32>
      %51 = arith.mulf %49, %50 : vector<8x32xf32>
      %c0_32 = arith.constant 0 : index
      %c0_33 = arith.constant 0 : index
      %52 = vector.load %arg6[%c0_32, %c0_33] : memref<32x128xf32, #tpu.memory_space<vmem>>, vector<32x128xf32>
      %cst_34 = arith.constant dense<0.000000e+00> : vector<8x128xf32>
      %53 = tpu.matmul %51, %52, %cst_34 {dimension_numbers = #tpu.dot_dimension_numbers<[1], [0], [0], [1], [0, 0, 1, 1], [], []>} : vector<8x32xf32>, vector<32x128xf32>, vector<8x128xf32> -> vector<8x128xf32>
      %c0_35 = arith.constant 0 : index
      %c0_36 = arith.constant 0 : index
      %54 = vector.load %arg7[%c0_35, %c0_36] : memref<1x128xf32, #tpu.memory_space<vmem>>, vector<1x128xf32>
      %55 = vector.broadcast %54 : vector<1x128xf32> to vector<8x128xf32>
      %56 = arith.addf %53, %55 : vector<8x128xf32>
      %c0_37 = arith.constant 0 : index
      %c0_38 = arith.constant 0 : index
      %57 = vector.load %arg8[%c0_37, %c0_38] : memref<8x128xf32, #tpu.memory_space<vmem>>, vector<8x128xf32>
      tpu.vector_store %arg8[%c0_37, %c0_38], %56 {strides = array<i32>} : memref<8x128xf32, #tpu.memory_space<vmem>>, vector<8x128xf32>,
    } else {
    }
    return
  }
  func.func @transform_0(%arg0: i32, %arg1: i32) -> (i32, i32, i32) {
    %c0_i32 = arith.constant 0 : i32
    %c0_i32_0 = arith.constant 0 : i32
    return %arg0, %arg1, %c0_i32 : i32, i32, i32
  }
  func.func @transform_1(%arg0: i32, %arg1: i32) -> (i32, i32) {
    %c0_i32 = arith.constant 0 : i32
    %c0_i32_0 = arith.constant 0 : i32
    %c0_i32_1 = arith.constant 0 : i32
    return %c0_i32, %c0_i32_0 : i32, i32
  }
  func.func @transform_2(%arg0: i32, %arg1: i32) -> (i32, i32) {
    %c0_i32 = arith.constant 0 : i32
    %c0_i32_0 = arith.constant 0 : i32
    %c0_i32_1 = arith.constant 0 : i32
    return %c0_i32, %c0_i32_0 : i32, i32
  }
  func.func @transform_3(%arg0: i32, %arg1: i32) -> (i32, i32) {
    %c0_i32 = arith.constant 0 : i32
    %c0_i32_0 = arith.constant 0 : i32
    %c0_i32_1 = arith.constant 0 : i32
    return %c0_i32, %c0_i32_0 : i32, i32
  }
  func.func @transform_4(%arg0: i32, %arg1: i32) -> (i32, i32) {
    %c0_i32 = arith.constant 0 : i32
    %c0_i32_0 = arith.constant 0 : i32
    %c0_i32_1 = arith.constant 0 : i32
    return %c0_i32, %c0_i32_0 : i32, i32
  }
  func.func @transform_5(%arg0: i32, %arg1: i32) -> (i32, i32) {
    %c0_i32 = arith.constant 0 : i32
    %c0_i32_0 = arith.constant 0 : i32
    %c0_i32_1 = arith.constant 0 : i32
    return %c0_i32, %c0_i32_0 : i32, i32
  }
  func.func @transform_6(%arg0: i32, %arg1: i32) -> (i32, i32) {
    %c0_i32 = arith.constant 0 : i32
    %c0_i32_0 = arith.constant 0 : i32
    return %arg0, %c0_i32 : i32, i32
  }
}

</mosaic_0001>

<llo_original>
// kernel: tpu_custom_call.1
$region0: #{tpu_custom_call.1}
  #allocation0 [shape = 'u32[]', space=smem, size = 0x4, offset = 0x4, fixed_abs, tag = 'smem constant byte address 0x4 - core index']
  #allocation1 [shape = 'u32[144,128]{1,0:T(1,128)}', space=vmem, size = 0x12000, scoped, tag = 'internal scratch']
  #allocation2 [shape = 'f32[8,1]{1,0:T(8,128)}', space=vmem, size = 0x1000, scoped, tag = 'scratch operand']
  #allocation3 [shape = 'f32[8,1]{1,0:T(8,128)}', space=vmem, size = 0x1000, scoped, tag = 'scratch operand']
  #allocation4 [shape = 'f32[8,32]{1,0:T(8,128)}', space=vmem, size = 0x1000, scoped, tag = 'scratch operand']
  %s0 = inlined_call_operand.hbm [shape: bf16[8,32,32], index: 0, kind: input, shape index: {}]
  %s1 = inlined_call_operand.hbm [shape: bf16[32,512], index: 1, kind: input, shape index: {}]
  %s2 = inlined_call_operand.hbm [shape: f32[1,512], index: 2, kind: input, shape index: {}]
  %s3 = inlined_call_operand.vmem [shape: f32[1,512], index: 3, kind: input, shape index: {}]
  %s4 = inlined_call_operand.hbm [shape: f32[32,128], index: 4, kind: input, shape index: {}]
  %s5 = inlined_call_operand.vmem [shape: f32[1,128], index: 5, kind: input, shape index: {}]
  %s6 = inlined_call_operand.hbm [shape: f32[8,128], index: 6, kind: output, shape index: {}]
  %s7 = sld [smem:[#allocation0]]
  $region81: #{tpu_custom_call.1} parent=0
    _
  %s9 = ssub.s32 1, %s7
  %s10 = scalar_select 0, %s9, %s7
  $region1: #{tpu_custom_call.1} parent=0
    #allocation5 [shape = 'u8[32768]{0}', space=vmem, size = 0x8000, scoped, tag = 'input window, operand 0']
    #allocation6 [shape = 's32[2]{0}', space=sflag, size = 0x8, scoped, tag = 'scoped memory for tpu_custom_call.1']
    #allocation7 [shape = 's32[2]{0}', space=sflag, size = 0x8, scoped, tag = 'scoped memory for tpu_custom_call.1']
    #allocation8 [shape = 'u8[32768]{0}', space=vmem, size = 0x8000, scoped, tag = 'input window, operand 1, single buffered']
    #allocation9 [shape = 's32[1]{0}', space=sflag, size = 0x4, scoped, tag = 'scoped memory for tpu_custom_call.1']
    #allocation10 [shape = 'u8[2048]{0}', space=vmem, size = 0x800, scoped, tag = 'input window, operand 2, single buffered']
    #allocation11 [shape = 'u8[16384]{0}', space=vmem, size = 0x4000, scoped, tag = 'input window, operand 4, single buffered']
    #allocation12 [shape = 's32[1]{0}', space=sflag, size = 0x4, scoped, tag = 'scoped memory for tpu_custom_call.1']
    #allocation13 [shape = 'u8[4096]{0}', space=vmem, size = 0x1000, scoped, tag = 'output window, operand 0, single buffered']
    %11 = vsyncpa [#allocation6], 0
    %s12 = scalar_lea.sflag [#allocation6], 1
    %13 = vsyncpa %s12, 0
    %14 = vsyncpa [#allocation9], 0
    %15 = vsyncpa [#allocation12], 0
    %16 = vsyncpa [#allocation7], 0
    loop: start=0, step=1, limit=6
    $region2: #{tpu_custom_call.1} parent=1 // loop_pre_header
      _
    $region3: #{tpu_custom_call.1} parent=1 // loop_header
      %s18 = sphi 0, %s22
      %p19 = scmp.ge.s32.totalorder %s18, 6
      %s25 = sphi 0, %s37
      %s26 = sphi 0, %s33
      %s27 = sphi 0, %s25
      %s28 = sphi 0, %s26
      %s29 = sphi 0, %s27
      %s30 = sphi 0, %s28
      %s42 = sphi 0, %s44
      %s45 = sphi 0, %s42
      %s46 = sphi 0, %s45
      %s62 = sphi 0, %s46
      %s66 = sphi 0, %s66
      %s68 = sphi 0, %s66
      %s69 = sphi 0, %s68
      %s83 = sphi 0, %s69
      %s87 = sphi 0, %s87
      %s89 = sphi 0, %s87
      %s90 = sphi 0, %s89
      %s104 = sphi 0, %s90
      %s108 = sphi 0, %s108
      %s110 = sphi 0, %s108
      %s111 = sphi 0, %s110
      %s125 = sphi 0, %s111
      %s129 = sphi 0, %s129
      %s131 = sphi 0, %s129
      %s132 = sphi 0, %s131
      %s146 = sphi 0, %s132
      %s150 = sphi 0, %s150
      %s152 = sphi 0, %s150
      %s153 = sphi 0, %s152
      %s167 = sphi 0, %s153
      %s173 = sphi 0, %s175
      %s176 = sphi 0, %s173
      %s177 = sphi 0, %s176
      %s193 = sphi 0, %s177
    $region4: #{tpu_custom_call.1} parent=1 // loop_header_branch
      %21 = sbr.rel (%p19) target = $region8
    $region5: #{tpu_custom_call.1} parent=1 // loop_body
      %s23 = ssub.s32 %s18, 1
      %s24 = ssub.s32 %s18, 2
      %s31 = sadd.s32 1, %s26
      %p32 = scmp.ge.s32.totalorder %s31, 4
      %s33 = scalar_select %p32, 0, %s31
      %s34 = sadd.s32 1, %s25
      %s35 = scalar_select %p32, %s34, %s25
      %p36 = scmp.ge.s32.totalorder %s35, 1
      %s37 = scalar_select %p36, 0, %s35
      %s38 = ssub.s32 %s25, %s37
      %s39 = ssub.s32 %s26, %s33
      %s40 = sor.u32 %s38, %s39
      %p41 = scmp.eq.s32.totalorder %s40, 0
      %s43 = sadd.s32 %s42, 1
      %s44 = scalar_select %p41, %s42, %s43
      %p47 = pneg %p41
      %p48 = scmp.eq.s32.totalorder %s18, 3
      %p49 = por %p47, %p48
      %p50 = scmp.ne.s32.totalorder %s42, %s45
      %p51 = scmp.eq.s32.totalorder %s18, 0
      %p52 = por %p50, %p51
      %p53 = scmp.ne.s32.totalorder %s42, %s45
      %p54 = scmp.eq.s32.totalorder %s23, 3
      %p55 = por %p53, %p54
      %p56 = scmp.ne.s32.totalorder %s45, %s46
      %p57 = scmp.eq.s32.totalorder %s23, 0
      %p58 = por %p56, %p57
      %p59 = scmp.ne.s32.totalorder %s45, %s46
      %p60 = scmp.eq.s32.totalorder %s24, 3
      %p61 = por %p59, %p60
      %p63 = scmp.ne.s32.totalorder %s46, %s62
      %p64 = scmp.eq.s32.totalorder %s24, 0
      %p65 = por %p63, %p64
      %s67 = sadd.s32 %s66, 1
      %p70 = scmp.eq.s32.totalorder %s18, 3
      %p71 = scmp.ne.s32.totalorder %s66, %s68
      %p72 = scmp.eq.s32.totalorder %s18, 0
      %p73 = por %p71, %p72
      %p74 = scmp.ne.s32.totalorder %s66, %s68
      %p75 = scmp.eq.s32.totalorder %s23, 3
      %p76 = por %p74, %p75
      %p77 = scmp.ne.s32.totalorder %s68, %s69
      %p78 = scmp.eq.s32.totalorder %s23, 0
      %p79 = por %p77, %p78
      %p80 = scmp.ne.s32.totalorder %s68, %s69
      %p81 = scmp.eq.s32.totalorder %s24, 3
      %p82 = por %p80, %p81
      %p84 = scmp.ne.s32.totalorder %s69, %s83
      %p85 = scmp.eq.s32.totalorder %s24, 0
      %p86 = por %p84, %p85
      %s88 = sadd.s32 %s87, 1
      %p91 = scmp.eq.s32.totalorder %s18, 3
      %p92 = scmp.ne.s32.totalorder %s87, %s89
      %p93 = scmp.eq.s32.totalorder %s18, 0
      %p94 = por %p92, %p93
      %p95 = scmp.ne.s32.totalorder %s87, %s89
      %p96 = scmp.eq.s32.totalorder %s23, 3
      %p97 = por %p95, %p96
      %p98 = scmp.ne.s32.totalorder %s89, %s90
      %p99 = scmp.eq.s32.totalorder %s23, 0
      %p100 = por %p98, %p99
      %p101 = scmp.ne.s32.totalorder %s89, %s90
      %p102 = scmp.eq.s32.totalorder %s24, 3
      %p103 = por %p101, %p102
      %p105 = scmp.ne.s32.totalorder %s90, %s104
      %p106 = scmp.eq.s32.totalorder %s24, 0
      %p107 = por %p105, %p106
      %s109 = sadd.s32 %s108, 1
      %p112 = scmp.eq.s32.totalorder %s18, 3
      %p113 = scmp.ne.s32.totalorder %s108, %s110
      %p114 = scmp.eq.s32.totalorder %s18, 0
      %p115 = por %p113, %p114
      %p116 = scmp.ne.s32.totalorder %s108, %s110
      %p117 = scmp.eq.s32.totalorder %s23, 3
      %p118 = por %p116, %p117
      %p119 = scmp.ne.s32.totalorder %s110, %s111
      %p120 = scmp.eq.s32.totalorder %s23, 0
      %p121 = por %p119, %p120
      %p122 = scmp.ne.s32.totalorder %s110, %s111
      %p123 = scmp.eq.s32.totalorder %s24, 3
      %p124 = por %p122, %p123
      %p126 = scmp.ne.s32.totalorder %s111, %s125
      %p127 = scmp.eq.s32.totalorder %s24, 0
      %p128 = por %p126, %p127
      %s130 = sadd.s32 %s129, 1
      %p133 = scmp.eq.s32.totalorder %s18, 3
      %p134 = scmp.ne.s32.totalorder %s129, %s131
      %p135 = scmp.eq.s32.totalorder %s18, 0
      %p136 = por %p134, %p135
      %p137 = scmp.ne.s32.totalorder %s129, %s131
      %p138 = scmp.eq.s32.totalorder %s23, 3
      %p139 = por %p137, %p138
      %p140 = scmp.ne.s32.totalorder %s131, %s132
      %p141 = scmp.eq.s32.totalorder %s23, 0
      %p142 = por %p140, %p141
      %p143 = scmp.ne.s32.totalorder %s131, %s132
      %p144 = scmp.eq.s32.totalorder %s24, 3
      %p145 = por %p143, %p144
      %p147 = scmp.ne.s32.totalorder %s132, %s146
      %p148 = scmp.eq.s32.totalorder %s24, 0
      %p149 = por %p147, %p148
      %s151 = sadd.s32 %s150, 1
      %p154 = scmp.eq.s32.totalorder %s18, 3
      %p155 = scmp.ne.s32.totalorder %s150, %s152
      %p156 = scmp.eq.s32.totalorder %s18, 0
      %p157 = por %p155, %p156
      %p158 = scmp.ne.s32.totalorder %s150, %s152
      %p159 = scmp.eq.s32.totalorder %s23, 3
      %p160 = por %p158, %p159
      %p161 = scmp.ne.s32.totalorder %s152, %s153
      %p162 = scmp.eq.s32.totalorder %s23, 0
      %p163 = por %p161, %p162
      %p164 = scmp.ne.s32.totalorder %s152, %s153
      %p165 = scmp.eq.s32.totalorder %s24, 3
      %p166 = por %p164, %p165
      %p168 = scmp.ne.s32.totalorder %s153, %s167
      %p169 = scmp.eq.s32.totalorder %s24, 0
      %p170 = por %p168, %p169
      %s171 = ssub.s32 %s25, %s37
      %p172 = scmp.eq.s32.totalorder %s171, 0
      %s174 = sadd.s32 %s173, 1
      %s175 = scalar_select %p172, %s173, %s174
      %p178 = pneg %p172
      %p179 = scmp.eq.s32.totalorder %s18, 3
      %p180 = por %p178, %p179
      %p181 = scmp.ne.s32.totalorder %s173, %s176
      %p182 = scmp.eq.s32.totalorder %s18, 0
      %p183 = por %p181, %p182
      %p184 = scmp.ne.s32.totalorder %s173, %s176
      %p185 = scmp.eq.s32.totalorder %s23, 3
      %p186 = por %p184, %p185
      %p187 = scmp.ne.s32.totalorder %s176, %s177
      %p188 = scmp.eq.s32.totalorder %s23, 0
      %p189 = por %p187, %p188
      %p190 = scmp.ne.s32.totalorder %s176, %s177
      %p191 = scmp.eq.s32.totalorder %s24, 3
      %p192 = por %p190, %p191
      %p194 = scmp.ne.s32.totalorder %s177, %s193
      %p195 = scmp.eq.s32.totalorder %s24, 0
      %p196 = por %p194, %p195
      %p197 = scmp.le.s32.totalorder 1, %s18
      %p198 = scmp.lt.s32.totalorder %s18, 5
      %p199 = pnand %p197, %p198
      %p200 = pneg %p199
      // Predicated region
      $region9: #{tpu_custom_call.1} parent=5 // pred_check
        _
      $region10: #{tpu_custom_call.1} parent=5 // pred_check_branch
        %202 = sbr.rel (%p199) target = $region12
      $region11: #{tpu_custom_call.1} parent=5 // pred_region
        %s203 = ssub.s32 %s18, 1
        // Predicated region
        $region13: #{tpu_custom_call.1} parent=11 // pred_check
          %p204 = pneg %p79
        $region14: #{tpu_custom_call.1} parent=11 // pred_check_branch
          %206 = sbr.rel (%p204) target = $region16
        $region15: #{tpu_custom_call.1} parent=11 // pred_region
          %s208 = ssub.s32 1024, 1024
          %209 = vsyncadd [#allocation9], %s208
          %s210 = sshll.u32 [#allocation8], 4
          %s211 = int_to_ptr.vmem [resolvable:$true] %s210
          %216 = dma.hbm_to_vmem [thread:$0]  %s1, 1024, %s211, [#allocation9], 256, 256, 16
        $region16: #{tpu_custom_call.1} parent=11 // pred_fallthru
          _
        // Predicated region
        $region17: #{tpu_custom_call.1} parent=11 // pred_check
          %p217 = pneg %p100
        $region18: #{tpu_custom_call.1} parent=11 // pred_check_branch
          %219 = sbr.rel (%p217) target = $region20
        $region19: #{tpu_custom_call.1} parent=11 // pred_region
          %s221 = ssub.s32 64, 64
          %222 = vsyncadd [#allocation9], %s221
          %s224 = sshll.u32 [#allocation10], 4
          %s225 = int_to_ptr.vmem [resolvable:$true] %s224
          %227 = dma.hbm_to_vmem [thread:$0]  %s2, 64, %s225, [#allocation9]
        $region20: #{tpu_custom_call.1} parent=11 // pred_fallthru
          _
        // Predicated region
        $region21: #{tpu_custom_call.1} parent=11 // pred_check
          %p228 = pneg %p121
        $region22: #{tpu_custom_call.1} parent=11 // pred_check_branch
          %230 = sbr.rel (%p228) target = $region24
        $region23: #{tpu_custom_call.1} parent=11 // pred_region
          _
        $region24: #{tpu_custom_call.1} parent=11 // pred_fallthru
          _
        // Predicated region
        $region25: #{tpu_custom_call.1} parent=11 // pred_check
          %p231 = pneg %p142
        $region26: #{tpu_custom_call.1} parent=11 // pred_check_branch
          %233 = sbr.rel (%p231) target = $region28
        $region27: #{tpu_custom_call.1} parent=11 // pred_region
          %s235 = ssub.s32 512, 512
          %236 = vsyncadd [#allocation12], %s235
          %s237 = sshll.u32 [#allocation11], 4
          %s238 = int_to_ptr.vmem [resolvable:$true] %s237
          %243 = dma.hbm_to_vmem [thread:$0]  %s4, 512, %s238, [#allocation12], 128, 128, 8
        $region28: #{tpu_custom_call.1} parent=11 // pred_fallthru
          _
        // Predicated region
        $region29: #{tpu_custom_call.1} parent=11 // pred_check
          %p244 = pneg %p163
        $region30: #{tpu_custom_call.1} parent=11 // pred_check_branch
          %246 = sbr.rel (%p244) target = $region32
        $region31: #{tpu_custom_call.1} parent=11 // pred_region
          _
        $region32: #{tpu_custom_call.1} parent=11 // pred_fallthru
          _
      $region12: #{tpu_custom_call.1} parent=5 // pred_fallthru
        _
      %p247 = scmp.lt.s32.totalorder %s18, 4
      // Predicated region
      $region33: #{tpu_custom_call.1} parent=5 // pred_check
        %p248 = pneg %p247
      $region34: #{tpu_custom_call.1} parent=5 // pred_check_branch
        %250 = sbr.rel (%p248) target = $region36
      $region35: #{tpu_custom_call.1} parent=5 // pred_region
        // Predicated region
        $region37: #{tpu_custom_call.1} parent=35 // pred_check
          %p251 = pneg %p52
        $region38: #{tpu_custom_call.1} parent=35 // pred_check_branch
          %253 = sbr.rel (%p251) target = $region40
        $region39: #{tpu_custom_call.1} parent=35 // pred_region
          %s254 = sand.u32 %s42, 1
          %s255 = scalar_lea.sflag [#allocation6], %s254
          %s256 = sand.u32 %s42, 1
          %s257 = smul.addr %s256, 32
          %s258 = scalar_lea.vmem [#allocation5], %s257
          %s259 = smul.u32 8, %s25
          %s261 = ssub.s32 512, 512
          %262 = vsyncadd %s255, %s261
          %s263 = smul.addr %s259, 4
          %s264 = sadd.s32 %s26, %s263
          %s265 = smul.addr %s264, 64
          %s266 = scalar_lea.hbm %s0, %s265
          %s267 = sshll.u32 %s258, 4
          %s268 = int_to_ptr.vmem [resolvable:$true] %s267
          %273 = dma.hbm_to_vmem [thread:$0]  %s266, 512, %s268, %s255, 256, 64, 4
        $region40: #{tpu_custom_call.1} parent=35 // pred_fallthru
          _
      $region36: #{tpu_custom_call.1} parent=5 // pred_fallthru
        _
      %p274 = scmp.le.s32.totalorder 1, %s18
      %p275 = scmp.lt.s32.totalorder %s18, 5
      %p276 = pnand %p274, %p275
      %p277 = pneg %p276
      // Predicated region
      $region41: #{tpu_custom_call.1} parent=5 // pred_check
        _
      $region42: #{tpu_custom_call.1} parent=5 // pred_check_branch
        %279 = sbr.rel (%p276) target = $region44
      $region43: #{tpu_custom_call.1} parent=5 // pred_region
        %s280 = ssub.s32 %s18, 1
        %s281 = sand.u32 %s45, 1
        %s282 = scalar_lea.sflag [#allocation6], %s281
        %s283 = sand.u32 %s45, 1
        %s284 = smul.addr %s283, 32
        %s285 = scalar_lea.vmem [#allocation5], %s284
        // Predicated region
        $region45: #{tpu_custom_call.1} parent=43 // pred_check
          %p286 = pneg %p58
        $region46: #{tpu_custom_call.1} parent=43 // pred_check_branch
          %288 = sbr.rel (%p286) target = $region48
        $region47: #{tpu_custom_call.1} parent=43 // pred_region
          %289 = dma.done %s282, 512
        $region48: #{tpu_custom_call.1} parent=43 // pred_fallthru
          _
        // Predicated region
        $region49: #{tpu_custom_call.1} parent=43 // pred_check
          %p290 = pneg %p79
        $region50: #{tpu_custom_call.1} parent=43 // pred_check_branch
          %292 = sbr.rel (%p290) target = $region52
        $region51: #{tpu_custom_call.1} parent=43 // pred_region
          %293 = dma.done [#allocation9], 1024
        $region52: #{tpu_custom_call.1} parent=43 // pred_fallthru
          _
        // Predicated region
        $region53: #{tpu_custom_call.1} parent=43 // pred_check
          %p294 = pneg %p100
        $region54: #{tpu_custom_call.1} parent=43 // pred_check_branch
          %296 = sbr.rel (%p294) target = $region56
        $region55: #{tpu_custom_call.1} parent=43 // pred_region
          %297 = dma.done [#allocation9], 64
        $region56: #{tpu_custom_call.1} parent=43 // pred_fallthru
          _
        // Predicated region
        $region57: #{tpu_custom_call.1} parent=43 // pred_check
          %p298 = pneg %p142
        $region58: #{tpu_custom_call.1} parent=43 // pred_check_branch
          %300 = sbr.rel (%p298) target = $region60
        $region59: #{tpu_custom_call.1} parent=43 // pred_region
          %301 = dma.done [#allocation12], 512
        $region60: #{tpu_custom_call.1} parent=43 // pred_fallthru
          _
        %s302 = sand.u32 %s45, 1
        %s303 = scalar_lea.sflag [#allocation6], %s302
        %s304 = sand.u32 %s45, 1
        %s305 = smul.addr %s304, 32
        %s306 = scalar_lea.vmem [#allocation5], %s305
        %p307 = pneg %p58
        %p308 = pneg %p55
        %p309 = pneg %p79
        %p310 = pneg %p76
        %p311 = pneg %p100
        %p312 = pneg %p97
        %p313 = pneg %p121
        %p314 = pneg %p118
        %p315 = pneg %p142
        %p316 = pneg %p139
        %p317 = pneg %p163
        %p318 = pneg %p160
        %p319 = pneg %p189
        %p320 = pneg %p186
        %s321 = smul.u32 8, %s27
        %p323 = scmp.eq.s32.totalorder %s28, 0
        // Predicated region
        $region61: #{tpu_custom_call.1} parent=43 // pred_check
          %p324 = pneg %p323
        $region62: #{tpu_custom_call.1} parent=43 // pred_check_branch
          %326 = sbr.rel (%p324) target = $region64
        $region63: #{tpu_custom_call.1} parent=43 // pred_region
          %vm327 = vcmask 7168
          %328 = vst.msk [vmem:[#allocation2] sm:$0xff] %vm327, -1e+30
          %329 = vst.msk [vmem:[#allocation3] sm:$0xff] %vm327, 0.0
          %vm330 = vcmask 261120
          %331 = vst.msk [vmem:[#allocation4] sm:$0xff] %vm330, 0.0
        $region64: #{tpu_custom_call.1} parent=43 // pred_fallthru
          _
        %v332 = vld [vmem:[%s285] sm:$0xf]
        %v333 = vld [vmem:[%s285 + $0x4] sm:$0xf]
        %v334 = vld [vmem:[%s285 + $0x8] sm:$0xf]
        %v335 = vld [vmem:[%s285 + $0xc] sm:$0xf]
        %v336 = vld [vmem:[%s285 + $0x10] sm:$0xf]
        %v337 = vld [vmem:[%s285 + $0x14] sm:$0xf]
        %v338 = vld [vmem:[%s285 + $0x18] sm:$0xf]
        %v339 = vld [vmem:[%s285 + $0x1c] sm:$0xf]
        %v340 = vld [vmem:[#allocation8] sm:$0xff]
        %v341 = vld [vmem:[#allocation8 + $0x8] sm:$0xff]
        %v342 = vld [vmem:[#allocation8 + $0x10] sm:$0xff]
        %v343 = vld [vmem:[#allocation8 + $0x18] sm:$0xff]
        %v344 = vld [vmem:[#allocation8 + $0x20] sm:$0xff]
        %v345 = vld [vmem:[#allocation8 + $0x28] sm:$0xff]
        %v346 = vld [vmem:[#allocation8 + $0x30] sm:$0xff]
        %v347 = vld [vmem:[#allocation8 + $0x38] sm:$0xff]
        %v348 = vld [vmem:[#allocation10] sm:$0xf]
        %v350 = vlaneseq
        %v351 = vshrl.u32 %v350, 7
        %v352 = vsub.s32 0, %v351
        %v353 = vrot.slane %v348, %v352
        %v354 = vlaneseq
        %v355 = vshrl.u32 %v354, 7
        %v356 = vsub.s32 1, %v355
        %v357 = vrot.slane %v348, %v356
        %v358 = vlaneseq
        %v359 = vshrl.u32 %v358, 7
        %v360 = vsub.s32 2, %v359
        %v361 = vrot.slane %v348, %v360
        %v362 = vlaneseq
        %v363 = vshrl.u32 %v362, 7
        %v364 = vsub.s32 3, %v363
        %v365 = vrot.slane %v348, %v364
        %v378 = vunpack.c.l.b16 %v332
        %v379 = vunpack.c.l.b16 %v333
        %v380 = vunpack.c.l.b16 %v334
        %v381 = vunpack.c.l.b16 %v335
        %v382 = vunpack.c.l.b16 %v336
        %v383 = vunpack.c.l.b16 %v337
        %v384 = vunpack.c.l.b16 %v338
        %v385 = vunpack.c.l.b16 %v339
        %v386 = vpack.c.b16 %v379, %v378
        %v387 = vpack.c.b16 %v381, %v380
        %v388 = vpack.c.b16 %v383, %v382
        %v389 = vpack.c.b16 %v385, %v384
        %v398 = vunpack.c.l.b16 %v340
        %v399 = vunpack.c.h.b16 %v340
        %v400 = vunpack.c.l.b16 %v341
        %v401 = vunpack.c.h.b16 %v341
        %v402 = vunpack.c.l.b16 %v342
        %v403 = vunpack.c.h.b16 %v342
        %v404 = vunpack.c.l.b16 %v343
        %v405 = vunpack.c.h.b16 %v343
        %v406 = vunpack.c.l.b16 %v344
        %v407 = vunpack.c.h.b16 %v344
        %v408 = vunpack.c.l.b16 %v345
        %v409 = vunpack.c.h.b16 %v345
        %v410 = vunpack.c.l.b16 %v346
        %v411 = vunpack.c.h.b16 %v346
        %v412 = vunpack.c.l.b16 %v347
        %v413 = vunpack.c.h.b16 %v347
        %v414 = vpack.c.b16 %v402, %v398
        %v415 = vpack.c.b16 %v403, %v399
        %v416 = vpack.c.b16 %v404, %v400
        %v417 = vpack.c.b16 %v405, %v401
        %v418 = vpack.c.b16 %v410, %v406
        %v419 = vpack.c.b16 %v411, %v407
        %v420 = vpack.c.b16 %v412, %v408
        %v421 = vpack.c.b16 %v413, %v409
        %vm430 = vcmask 261120
        %v432 = vsel %vm430, %v386, 0
        %v435 = vsel %vm430, %v387, 0
        %v438 = vsel %vm430, %v388, 0
        %v441 = vsel %vm430, %v389, 0
        %443 = vmatprep.subr.bf16.mxu0 0
        %444 = vmatpush1.bf16.msra.mxu0 0
        %445 = vmatprep.subr.bf16.mxu0 0
        %446 = vmatpush1.bf16.msra.mxu0 0
        %447 = vmatprep.subr.bf16.mxu0 0
        %448 = vmatpush1.bf16.msra.mxu0 0
        %449 = vmatprep.subr.bf16.mxu0 0
        %450 = vmatpush1.bf16.msra.mxu0 0
        %451 = vmatprep.subr.bf16.mxu0 0
        %452 = vmatpush1.bf16.msra.mxu0 0
        %453 = vmatprep.subr.bf16.mxu0 0
        %454 = vmatpush1.bf16.msra.mxu0 0
        %455 = vmatprep.subr.bf16.mxu0 %v419
        %456 = vmatpush1.bf16.msra.mxu0 %v418
        %457 = vmatprep.subr.bf16.mxu0 %v415
        %458 = vmatpush1.bf16.msra.mxu0 %v414
        %459 = vmatprep.subr.bf16.mxu0 0
        %460 = vmatpush2.bf16.msra.mxu0 0
        %461 = vmatprep.subr.bf16.mxu0 0
        %462 = vmatpush2.bf16.msra.mxu0 0
        %463 = vmatprep.subr.bf16.mxu0 0
        %464 = vmatpush2.bf16.msra.mxu0 0
        %465 = vmatprep.subr.bf16.mxu0 0
        %466 = vmatpush2.bf16.msra.mxu0 0
        %467 = vmatprep.subr.bf16.mxu0 0
        %468 = vmatpush2.bf16.msra.mxu0 0
        %469 = vmatprep.subr.bf16.mxu0 0
        %470 = vmatpush2.bf16.msra.mxu0 0
        %471 = vmatprep.subr.bf16.mxu0 0
        %472 = vmatpush2.bf16.msra.mxu0 0
        %473 = vmatprep.subr.bf16.mxu0 0
        %474 = vmatpush2.bf16.msra.mxu0 0
        %475 = vmatprep.mubr.bf16.mxu0 0
        %476 = vmatmul.mubr.bf16.gmra.mxu0 %v432
        %v477 = vpop.f32.mrf.mxu0
        %v478 = vadd.f32 %v353, %v477
        %v479 = vpop.f32.mrf.mxu0
        %v480 = vadd.f32 %v357, %v479
        %v481 = vpop.f32.mrf.mxu0
        %v482 = vadd.f32 %v353, %v481
        %v483 = vpop.f32.mrf.mxu0
        %v484 = vadd.f32 %v357, %v483
        %485 = vmatprep.mubr.bf16.mxu0 0
        %486 = vmatmul.mubr.bf16.gmra.mxu0 %v435
        %v487 = vpop.f32.mrf.mxu0
        %v488 = vadd.f32 %v353, %v487
        %v489 = vpop.f32.mrf.mxu0
        %v490 = vadd.f32 %v357, %v489
        %v491 = vpop.f32.mrf.mxu0
        %v492 = vadd.f32 %v353, %v491
        %v493 = vpop.f32.mrf.mxu0
        %v494 = vadd.f32 %v357, %v493
        %495 = vmatprep.mubr.bf16.mxu0 0
        %496 = vmatmul.mubr.bf16.gmra.mxu0 %v438
        %v497 = vpop.f32.mrf.mxu0
        %v498 = vadd.f32 %v353, %v497
        %v499 = vpop.f32.mrf.mxu0
        %v500 = vadd.f32 %v357, %v499
        %v501 = vpop.f32.mrf.mxu0
        %v502 = vadd.f32 %v353, %v501
        %v503 = vpop.f32.mrf.mxu0
        %v504 = vadd.f32 %v357, %v503
        %505 = vmatprep.mubr.bf16.mxu0 0
        %506 = vmatmul.mubr.bf16.gmra.mxu0 %v441
        %v507 = vpop.f32.mrf.mxu0
        %v508 = vadd.f32 %v353, %v507
        %v509 = vpop.f32.mrf.mxu0
        %v510 = vadd.f32 %v357, %v509
        %v511 = vpop.f32.mrf.mxu0
        %v512 = vadd.f32 %v353, %v511
        %v513 = vpop.f32.mrf.mxu0
        %v514 = vadd.f32 %v357, %v513
        %515 = vdwg.mxu0
        %516 = vmatprep.subr.bf16.mxu0 0
        %517 = vmatpush1.bf16.msra.mxu0 0
        %518 = vmatprep.subr.bf16.mxu0 0
        %519 = vmatpush1.bf16.msra.mxu0 0
        %520 = vmatprep.subr.bf16.mxu0 0
        %521 = vmatpush1.bf16.msra.mxu0 0
        %522 = vmatprep.subr.bf16.mxu0 0
        %523 = vmatpush1.bf16.msra.mxu0 0
        %524 = vmatprep.subr.bf16.mxu0 0
        %525 = vmatpush1.bf16.msra.mxu0 0
        %526 = vmatprep.subr.bf16.mxu0 0
        %527 = vmatpush1.bf16.msra.mxu0 0
        %528 = vmatprep.subr.bf16.mxu0 %v421
        %529 = vmatpush1.bf16.msra.mxu0 %v420
        %530 = vmatprep.subr.bf16.mxu0 %v417
        %531 = vmatpush1.bf16.msra.mxu0 %v416
        %532 = vmatprep.subr.bf16.mxu0 0
        %533 = vmatpush2.bf16.msra.mxu0 0
        %534 = vmatprep.subr.bf16.mxu0 0
        %535 = vmatpush2.bf16.msra.mxu0 0
        %536 = vmatprep.subr.bf16.mxu0 0
        %537 = vmatpush2.bf16.msra.mxu0 0
        %538 = vmatprep.subr.bf16.mxu0 0
        %539 = vmatpush2.bf16.msra.mxu0 0
        %540 = vmatprep.subr.bf16.mxu0 0
        %541 = vmatpush2.bf16.msra.mxu0 0
        %542 = vmatprep.subr.bf16.mxu0 0
        %543 = vmatpush2.bf16.msra.mxu0 0
        %544 = vmatprep.subr.bf16.mxu0 0
        %545 = vmatpush2.bf16.msra.mxu0 0
        %546 = vmatprep.subr.bf16.mxu0 0
        %547 = vmatpush2.bf16.msra.mxu0 0
        %548 = vmatprep.mubr.bf16.mxu0 0
        %549 = vmatmul.mubr.bf16.gmra.mxu0 %v432
        %v550 = vpop.f32.mrf.mxu0
        %v551 = vadd.f32 %v361, %v550
        %v552 = vpop.f32.mrf.mxu0
        %v553 = vadd.f32 %v365, %v552
        %v554 = vpop.f32.mrf.mxu0
        %v555 = vadd.f32 %v361, %v554
        %v556 = vpop.f32.mrf.mxu0
        %v557 = vadd.f32 %v365, %v556
        %558 = vmatprep.mubr.bf16.mxu0 0
        %559 = vmatmul.mubr.bf16.gmra.mxu0 %v435
        %v560 = vpop.f32.mrf.mxu0
        %v561 = vadd.f32 %v361, %v560
        %v562 = vpop.f32.mrf.mxu0
        %v563 = vadd.f32 %v365, %v562
        %v564 = vpop.f32.mrf.mxu0
        %v565 = vadd.f32 %v361, %v564
        %v566 = vpop.f32.mrf.mxu0
        %v567 = vadd.f32 %v365, %v566
        %568 = vmatprep.mubr.bf16.mxu0 0
        %569 = vmatmul.mubr.bf16.gmra.mxu0 %v438
        %v570 = vpop.f32.mrf.mxu0
        %v571 = vadd.f32 %v361, %v570
        %v572 = vpop.f32.mrf.mxu0
        %v573 = vadd.f32 %v365, %v572
        %v574 = vpop.f32.mrf.mxu0
        %v575 = vadd.f32 %v361, %v574
        %v576 = vpop.f32.mrf.mxu0
        %v577 = vadd.f32 %v365, %v576
        %578 = vmatprep.mubr.bf16.mxu0 0
        %579 = vmatmul.mubr.bf16.gmra.mxu0 %v441
        %v580 = vpop.f32.mrf.mxu0
        %v581 = vadd.f32 %v361, %v580
        %v582 = vpop.f32.mrf.mxu0
        %v583 = vadd.f32 %v365, %v582
        %v584 = vpop.f32.mrf.mxu0
        %v585 = vadd.f32 %v361, %v584
        %v586 = vpop.f32.mrf.mxu0
        %v587 = vadd.f32 %v365, %v586
        %588 = vdwg.mxu0
        %v589 = vtanh.pop %v478
        %v590 = vtanh.pop %v480
        %v591 = vtanh.pop %v551
        %v592 = vtanh.pop %v553
        %v593 = vtanh.pop %v482
        %v594 = vtanh.pop %v484
        %v595 = vtanh.pop %v555
        %v596 = vtanh.pop %v557
        %v597 = vtanh.pop %v488
        %v598 = vtanh.pop %v490
        %v599 = vtanh.pop %v561
        %v600 = vtanh.pop %v563
        %v601 = vtanh.pop %v492
        %v602 = vtanh.pop %v494
        %v603 = vtanh.pop %v565
        %v604 = vtanh.pop %v567
        %v605 = vtanh.pop %v498
        %v606 = vtanh.pop %v500
        %v607 = vtanh.pop %v571
        %v608 = vtanh.pop %v573
        %v609 = vtanh.pop %v502
        %v610 = vtanh.pop %v504
        %v611 = vtanh.pop %v575
        %v612 = vtanh.pop %v577
        %v613 = vtanh.pop %v508
        %v614 = vtanh.pop %v510
        %v615 = vtanh.pop %v581
        %v616 = vtanh.pop %v583
        %v617 = vtanh.pop %v512
        %v618 = vtanh.pop %v514
        %v619 = vtanh.pop %v585
        %v620 = vtanh.pop %v587
        %v621 = vld [vmem:[%s3] sm:$0xf]
        %v623 = vlaneseq
        %v624 = vshrl.u32 %v623, 7
        %v625 = vsub.s32 0, %v624
        %v626 = vrot.slane %v621, %v625
        %v627 = vlaneseq
        %v628 = vshrl.u32 %v627, 7
        %v629 = vsub.s32 1, %v628
        %v630 = vrot.slane %v621, %v629
        %v631 = vlaneseq
        %v632 = vshrl.u32 %v631, 7
        %v633 = vsub.s32 2, %v632
        %v634 = vrot.slane %v621, %v633
        %v635 = vlaneseq
        %v636 = vshrl.u32 %v635, 7
        %v637 = vsub.s32 3, %v636
        %v638 = vrot.slane %v621, %v637
        %v643 = vmul.f32 %v589, %v626
        %v644 = vmul.f32 %v590, %v630
        %v645 = vmul.f32 %v591, %v634
        %v646 = vmul.f32 %v592, %v638
        %v647 = vmul.f32 %v593, %v626
        %v648 = vmul.f32 %v594, %v630
        %v649 = vmul.f32 %v595, %v634
        %v650 = vmul.f32 %v596, %v638
        %v651 = vmul.f32 %v597, %v626
        %v652 = vmul.f32 %v598, %v630
        %v653 = vmul.f32 %v599, %v634
        %v654 = vmul.f32 %v600, %v638
        %v655 = vmul.f32 %v601, %v626
        %v656 = vmul.f32 %v602, %v630
        %v657 = vmul.f32 %v603, %v634
        %v658 = vmul.f32 %v604, %v638
        %v659 = vmul.f32 %v605, %v626
        %v660 = vmul.f32 %v606, %v630
        %v661 = vmul.f32 %v607, %v634
        %v662 = vmul.f32 %v608, %v638
        %v663 = vmul.f32 %v609, %v626
        %v664 = vmul.f32 %v610, %v630
        %v665 = vmul.f32 %v611, %v634
        %v666 = vmul.f32 %v612, %v638
        %v667 = vmul.f32 %v613, %v626
        %v668 = vmul.f32 %v614, %v630
        %v669 = vmul.f32 %v615, %v634
        %v670 = vmul.f32 %v616, %v638
        %v671 = vmul.f32 %v617, %v626
        %v672 = vmul.f32 %v618, %v630
        %v673 = vmul.f32 %v619, %v634
        %v674 = vmul.f32 %v620, %v638
        %v675 = vadd.f32 %v643, %v644
        %v676 = vadd.f32 %v675, %v645
        %v677 = vadd.f32 %v676, %v646
        %678 = vadd.xlane.f32.xlu0 %v677
        %v679 = vpop.xlane.xlu0 %678
        %v680 = vadd.f32 %v647, %v648
        %v681 = vadd.f32 %v680, %v649
        %v682 = vadd.f32 %v681, %v650
        %683 = vadd.xlane.f32.xlu0 %v682
        %v684 = vpop.xlane.xlu0 %683
        %v685 = vadd.f32 %v651, %v652
        %v686 = vadd.f32 %v685, %v653
        %v687 = vadd.f32 %v686, %v654
        %688 = vadd.xlane.f32.xlu0 %v687
        %v689 = vpop.xlane.xlu0 %688
        %v690 = vadd.f32 %v655, %v656
        %v691 = vadd.f32 %v690, %v657
        %v692 = vadd.f32 %v691, %v658
        %693 = vadd.xlane.f32.xlu0 %v692
        %v694 = vpop.xlane.xlu0 %693
        %v695 = vadd.f32 %v659, %v660
        %v696 = vadd.f32 %v695, %v661
        %v697 = vadd.f32 %v696, %v662
        %698 = vadd.xlane.f32.xlu0 %v697
        %v699 = vpop.xlane.xlu0 %698
        %v700 = vadd.f32 %v663, %v664
        %v701 = vadd.f32 %v700, %v665
        %v702 = vadd.f32 %v701, %v666
        %703 = vadd.xlane.f32.xlu0 %v702
        %v704 = vpop.xlane.xlu0 %703
        %v705 = vadd.f32 %v667, %v668
        %v706 = vadd.f32 %v705, %v669
        %v707 = vadd.f32 %v706, %v670
        %708 = vadd.xlane.f32.xlu0 %v707
        %v709 = vpop.xlane.xlu0 %708
        %v710 = vadd.f32 %v671, %v672
        %v711 = vadd.f32 %v710, %v673
        %v712 = vadd.f32 %v711, %v674
        %713 = vadd.xlane.f32.xlu0 %v712
        %v714 = vpop.xlane.xlu0 %713
        %v715 = vld [vmem:[#allocation2] sm:$0xff]
        %v724 = vlaneseq
        %v725 = vand.u32 %v724, 127
        %v726 = vlaneseq
        %v727 = vshrl.u32 %v726, 7
        %v728 = vsub.s32 %v725, %v727
        %v729 = vrot.slane %v679, %v728
        %v730 = vlaneseq
        %v731 = vshrl.u32 %v730, 7
        %v732 = vsub.s32 %v725, %v731
        %v733 = vrot.slane %v684, %v732
        %v734 = vlaneseq
        %v735 = vshrl.u32 %v734, 7
        %v736 = vsub.s32 %v725, %v735
        %v737 = vrot.slane %v689, %v736
        %v738 = vlaneseq
        %v739 = vshrl.u32 %v738, 7
        %v740 = vsub.s32 %v725, %v739
        %v741 = vrot.slane %v694, %v740
        %v742 = vlaneseq
        %v743 = vshrl.u32 %v742, 7
        %v744 = vsub.s32 %v725, %v743
        %v745 = vrot.slane %v699, %v744
        %v746 = vlaneseq
        %v747 = vshrl.u32 %v746, 7
        %v748 = vsub.s32 %v725, %v747
        %v749 = vrot.slane %v704, %v748
        %v750 = vlaneseq
        %v751 = vshrl.u32 %v750, 7
        %v752 = vsub.s32 %v725, %v751
        %v753 = vrot.slane %v709, %v752
        %v754 = vlaneseq
        %v755 = vshrl.u32 %v754, 7
        %v756 = vsub.s32 %v725, %v755
        %v757 = vrot.slane %v714, %v756
        %vm758 = vcmask 1041409
        %v759 = vsel %vm758, %v733, %v729
        %vm760 = vcmask 1042434
        %v761 = vsel %vm760, %v737, %v759
        %vm762 = vcmask 1043459
        %v763 = vsel %vm762, %v741, %v761
        %vm764 = vcmask 1044484
        %v765 = vsel %vm764, %v745, %v763
        %vm766 = vcmask 1045509
        %v767 = vsel %vm766, %v749, %v765
        %vm768 = vcmask 1046534
        %v769 = vsel %vm768, %v753, %v767
        %vm770 = vcmask 1047559
        %v771 = vsel %vm770, %v757, %v769
        %vm773 = vcmask 64512
        %v774 = vsel %vm773, %v771, -inf
        %775 = vmax.xlane.f32.xlu0 %v774
        %v776 = vpop.xlane.xlu0 %775
        %v777 = vmax.f32 %v715, %v776
        %v778 = vsub.f32 %v715, %v777
        %v779 = vmul.f32 %v778, 1.442695
        %v780 = vpow.pop %v779
        %782 = vset.pattern.permute.xlu0 0
        %783 = vperm.xlu0 %782, %v777
        %v784 = vpop.permute.xlu0 %783
        %v785 = vlaneseq
        %v786 = vshrl.u32 %v785, 7
        %v787 = vsub.s32 0, %v786
        %v788 = vrot.slane %v784, %v787
        %v789 = vlaneseq
        %v790 = vshrl.u32 %v789, 7
        %v791 = vsub.s32 1, %v790
        %v792 = vrot.slane %v784, %v791
        %v793 = vlaneseq
        %v794 = vshrl.u32 %v793, 7
        %v795 = vsub.s32 2, %v794
        %v796 = vrot.slane %v784, %v795
        %v797 = vlaneseq
        %v798 = vshrl.u32 %v797, 7
        %v799 = vsub.s32 3, %v798
        %v800 = vrot.slane %v784, %v799
        %v801 = vlaneseq
        %v802 = vshrl.u32 %v801, 7
        %v803 = vsub.s32 4, %v802
        %v804 = vrot.slane %v784, %v803
        %v805 = vlaneseq
        %v806 = vshrl.u32 %v805, 7
        %v807 = vsub.s32 5, %v806
        %v808 = vrot.slane %v784, %v807
        %v809 = vlaneseq
        %v810 = vshrl.u32 %v809, 7
        %v811 = vsub.s32 6, %v810
        %v812 = vrot.slane %v784, %v811
        %v813 = vlaneseq
        %v814 = vshrl.u32 %v813, 7
        %v815 = vsub.s32 7, %v814
        %v816 = vrot.slane %v784, %v815
        %v825 = vsub.f32 %v679, %v788
        %v826 = vsub.f32 %v684, %v792
        %v827 = vsub.f32 %v689, %v796
        %v828 = vsub.f32 %v694, %v800
        %v829 = vsub.f32 %v699, %v804
        %v830 = vsub.f32 %v704, %v808
        %v831 = vsub.f32 %v709, %v812
        %v832 = vsub.f32 %v714, %v816
        %v833 = vmul.f32 %v825, 1.442695
        %v834 = vpow.pop %v833
        %v835 = vmul.f32 %v826, 1.442695
        %v836 = vpow.pop %v835
        %v837 = vmul.f32 %v827, 1.442695
        %v838 = vpow.pop %v837
        %v839 = vmul.f32 %v828, 1.442695
        %v840 = vpow.pop %v839
        %v841 = vmul.f32 %v829, 1.442695
        %v842 = vpow.pop %v841
        %v843 = vmul.f32 %v830, 1.442695
        %v844 = vpow.pop %v843
        %v845 = vmul.f32 %v831, 1.442695
        %v846 = vpow.pop %v845
        %v847 = vmul.f32 %v832, 1.442695
        %v848 = vpow.pop %v847
        %v849 = vld [vmem:[#allocation3] sm:$0xff]
        %v850 = vmul.f32 %v780, %v849
        %859 = vset.pattern.permute.xlu0 0
        %860 = vperm.xlu0 %859, %v834
        %v861 = vpop.permute.xlu0 %860
        %862 = vset.pattern.permute.xlu0 0
        %863 = vperm.xlu0 %862, %v836
        %v864 = vpop.permute.xlu0 %863
        %865 = vset.pattern.permute.xlu0 0
        %866 = vperm.xlu0 %865, %v838
        %v867 = vpop.permute.xlu0 %866
        %868 = vset.pattern.permute.xlu0 0
        %869 = vperm.xlu0 %868, %v840
        %v870 = vpop.permute.xlu0 %869
        %871 = vset.pattern.permute.xlu0 0
        %872 = vperm.xlu0 %871, %v842
        %v873 = vpop.permute.xlu0 %872
        %874 = vset.pattern.permute.xlu0 0
        %875 = vperm.xlu0 %874, %v844
        %v876 = vpop.permute.xlu0 %875
        %877 = vset.pattern.permute.xlu0 0
        %878 = vperm.xlu0 %877, %v846
        %v879 = vpop.permute.xlu0 %878
        %880 = vset.pattern.permute.xlu0 0
        %881 = vperm.xlu0 %880, %v848
        %v882 = vpop.permute.xlu0 %881
        %v883 = vlaneseq
        %v884 = vshrl.u32 %v883, 7
        %v885 = vsub.s32 %v725, %v884
        %v886 = vrot.slane %v861, %v885
        %v887 = vlaneseq
        %v888 = vshrl.u32 %v887, 7
        %v889 = vsub.s32 %v725, %v888
        %v890 = vrot.slane %v864, %v889
        %v891 = vlaneseq
        %v892 = vshrl.u32 %v891, 7
        %v893 = vsub.s32 %v725, %v892
        %v894 = vrot.slane %v867, %v893
        %v895 = vlaneseq
        %v896 = vshrl.u32 %v895, 7
        %v897 = vsub.s32 %v725, %v896
        %v898 = vrot.slane %v870, %v897
        %v899 = vlaneseq
        %v900 = vshrl.u32 %v899, 7
        %v901 = vsub.s32 %v725, %v900
        %v902 = vrot.slane %v873, %v901
        %v903 = vlaneseq
        %v904 = vshrl.u32 %v903, 7
        %v905 = vsub.s32 %v725, %v904
        %v906 = vrot.slane %v876, %v905
        %v907 = vlaneseq
        %v908 = vshrl.u32 %v907, 7
        %v909 = vsub.s32 %v725, %v908
        %v910 = vrot.slane %v879, %v909
        %v911 = vlaneseq
        %v912 = vshrl.u32 %v911, 7
        %v913 = vsub.s32 %v725, %v912
        %v914 = vrot.slane %v882, %v913
        %v915 = vsel %vm758, %v890, %v886
        %v916 = vsel %vm760, %v894, %v915
        %v917 = vsel %vm762, %v898, %v916
        %v918 = vsel %vm764, %v902, %v917
        %v919 = vsel %vm766, %v906, %v918
        %v920 = vsel %vm768, %v910, %v919
        %v921 = vsel %vm770, %v914, %v920
        %v923 = vsel %vm773, %v921, 0.0
        %924 = vadd.xlane.f32.xlu0 %v923
        %v925 = vpop.xlane.xlu0 %924
        %v926 = vadd.f32 %v850, %v925
        %vm927 = vcmask 7168
        %928 = vst.msk [vmem:[#allocation3] sm:$0xff] %vm927, %v926
        %v929 = vld [vmem:[#allocation4] sm:$0xff]
        %931 = vset.pattern.permute.xlu0 0
        %932 = vperm.xlu0 %931, %v780
        %v933 = vpop.permute.xlu0 %932
        %v935 = vmul.f32 %v933, %v929
        %v936 = vunpack.c.l.bf16 %v332
        %v937 = vunpack.c.l.bf16 %v333
        %v938 = vunpack.c.l.bf16 %v334
        %v939 = vunpack.c.l.bf16 %v335
        %v940 = vunpack.c.l.bf16 %v336
        %v941 = vunpack.c.l.bf16 %v337
        %v942 = vunpack.c.l.bf16 %v338
        %v943 = vunpack.c.l.bf16 %v339
        %v952 = vmul.f32 %v861, %v936
        %v953 = vmul.f32 %v864, %v937
        %v954 = vmul.f32 %v867, %v938
        %v955 = vmul.f32 %v870, %v939
        %v956 = vmul.f32 %v873, %v940
        %v957 = vmul.f32 %v876, %v941
        %v958 = vmul.f32 %v879, %v942
        %v959 = vmul.f32 %v882, %v943
        %v960 = vsel %vm430, %v952, 0.0
        %v961 = vrot.slane %v960, 4
        %v962 = vadd.f32 %v960, %v961
        %v963 = vrot.slane %v962, 2
        %v964 = vadd.f32 %v962, %v963
        %v965 = vrot.slane %v964, 1
        %v966 = vadd.f32 %v964, %v965
        %v967 = vsel %vm430, %v953, 0.0
        %v968 = vrot.slane %v967, 4
        %v969 = vadd.f32 %v967, %v968
        %v970 = vrot.slane %v969, 2
        %v971 = vadd.f32 %v969, %v970
        %v972 = vrot.slane %v971, 1
        %v973 = vadd.f32 %v971, %v972
        %v974 = vsel %vm430, %v954, 0.0
        %v975 = vrot.slane %v974, 4
        %v976 = vadd.f32 %v974, %v975
        %v977 = vrot.slane %v976, 2
        %v978 = vadd.f32 %v976, %v977
        %v979 = vrot.slane %v978, 1
        %v980 = vadd.f32 %v978, %v979
        %v981 = vsel %vm430, %v955, 0.0
        %v982 = vrot.slane %v981, 4
        %v983 = vadd.f32 %v981, %v982
        %v984 = vrot.slane %v983, 2
        %v985 = vadd.f32 %v983, %v984
        %v986 = vrot.slane %v985, 1
        %v987 = vadd.f32 %v985, %v986
        %v988 = vsel %vm430, %v956, 0.0
        %v989 = vrot.slane %v988, 4
        %v990 = vadd.f32 %v988, %v989
        %v991 = vrot.slane %v990, 2
        %v992 = vadd.f32 %v990, %v991
        %v993 = vrot.slane %v992, 1
        %v994 = vadd.f32 %v992, %v993
        %v995 = vsel %vm430, %v957, 0.0
        %v996 = vrot.slane %v995, 4
        %v997 = vadd.f32 %v995, %v996
        %v998 = vrot.slane %v997, 2
        %v999 = vadd.f32 %v997, %v998
        %v1000 = vrot.slane %v999, 1
        %v1001 = vadd.f32 %v999, %v1000
        %v1002 = vsel %vm430, %v958, 0.0
        %v1003 = vrot.slane %v1002, 4
        %v1004 = vadd.f32 %v1002, %v1003
        %v1005 = vrot.slane %v1004, 2
        %v1006 = vadd.f32 %v1004, %v1005
        %v1007 = vrot.slane %v1006, 1
        %v1008 = vadd.f32 %v1006, %v1007
        %v1009 = vsel %vm430, %v959, 0.0
        %v1010 = vrot.slane %v1009, 4
        %v1011 = vadd.f32 %v1009, %v1010
        %v1012 = vrot.slane %v1011, 2
        %v1013 = vadd.f32 %v1011, %v1012
        %v1014 = vrot.slane %v1013, 1
        %v1015 = vadd.f32 %v1013, %v1014
        %v1024 = vsel %vm758, %v973, %v966
        %v1025 = vsel %vm760, %v980, %v1024
        %v1026 = vsel %vm762, %v987, %v1025
        %v1027 = vsel %vm764, %v994, %v1026
        %v1028 = vsel %vm766, %v1001, %v1027
        %v1029 = vsel %vm768, %v1008, %v1028
        %v1030 = vsel %vm770, %v1015, %v1029
        %v1032 = vadd.f32 %v935, %v1030
        %1033 = vst.msk [vmem:[#allocation4] sm:$0xff] %vm430, %v1032
        %1034 = vst.msk [vmem:[#allocation2] sm:$0xff] %vm927, %v777
        %p1035 = scmp.eq.s32.totalorder %s28, 3
        // Predicated region
        $region65: #{tpu_custom_call.1} parent=43 // pred_check
          %p1036 = pneg %p1035
        $region66: #{tpu_custom_call.1} parent=43 // pred_check_branch
          %1038 = sbr.rel (%p1036) target = $region68
        $region67: #{tpu_custom_call.1} parent=43 // pred_region
          %v1039 = vld [vmem:[#allocation3] sm:$0xff]
          %v1040 = vrcp.pop %v1039
          %v1041 = vld [vmem:[#allocation4] sm:$0xff]
          %1043 = vset.pattern.permute.xlu0 0
          %1044 = vperm.xlu0 %1043, %v1040
          %v1045 = vpop.permute.xlu0 %1044
          %v1047 = vmul.f32 %v1041, %v1045
          %v1048 = vld [vmem:[#allocation11] sm:$0xff]
          %v1049 = vld [vmem:[#allocation11 + $0x8] sm:$0xff]
          %v1050 = vld [vmem:[#allocation11 + $0x10] sm:$0xff]
          %v1051 = vld [vmem:[#allocation11 + $0x18] sm:$0xff]
          %v1052 = vld [vmem:[%s5] sm:$0x1]
          %v1054 = vlaneseq
          %v1055 = vshrl.u32 %v1054, 7
          %v1056 = vsub.s32 0, %v1055
          %v1057 = vrot.slane %v1052, %v1056
          %v1060 = vsel %vm430, %v1047, 0
          %1062 = vmatprep.subr.mxu0 0.0
          %1063 = vmatpush1.msra.mxu0 0.0
          %1064 = vmatprep.subr.mxu0 0.0
          %1065 = vmatpush1.msra.mxu0 0.0
          %1066 = vmatprep.subr.mxu0 0.0
          %1067 = vmatpush1.msra.mxu0 0.0
          %1068 = vmatprep.subr.mxu0 0.0
          %1069 = vmatpush1.msra.mxu0 0.0
          %1070 = vmatprep.subr.mxu0 0.0
          %1071 = vmatpush1.msra.mxu0 0.0
          %1072 = vmatprep.subr.mxu0 0.0
          %1073 = vmatpush1.msra.mxu0 0.0
          %1074 = vmatprep.subr.mxu0 0.0
          %1075 = vmatpush1.msra.mxu0 0.0
          %1076 = vmatprep.subr.mxu0 0.0
          %1077 = vmatpush1.msra.mxu0 0.0
          %1078 = vmatprep.subr.mxu0 0.0
          %1079 = vmatpush1.msra.mxu0 0.0
          %1080 = vmatprep.subr.mxu0 0.0
          %1081 = vmatpush1.msra.mxu0 0.0
          %1082 = vmatprep.subr.mxu0 0.0
          %1083 = vmatpush1.msra.mxu0 0.0
          %1084 = vmatprep.subr.mxu0 0.0
          %1085 = vmatpush1.msra.mxu0 0.0
          %1086 = vmatprep.subr.mxu0 0.0
          %1087 = vmatpush1.msra.mxu0 %v1051
          %1088 = vmatprep.subr.mxu0 0.0
          %1089 = vmatpush1.msra.mxu0 %v1050
          %1090 = vmatprep.subr.mxu0 0.0
          %1091 = vmatpush1.msra.mxu0 %v1049
          %1092 = vmatprep.subr.mxu0 0.0
          %1093 = vmatpush1.msra.mxu0 %v1048
          %1094 = vmatprep.subr.mxu0 0.0
          %1095 = vmatpush2.msra.mxu0 0.0
          %1096 = vmatprep.subr.mxu0 0.0
          %1097 = vmatpush2.msra.mxu0 0.0
          %1098 = vmatprep.subr.mxu0 0.0
          %1099 = vmatpush2.msra.mxu0 0.0
          %1100 = vmatprep.subr.mxu0 0.0
          %1101 = vmatpush2.msra.mxu0 0.0
          %1102 = vmatprep.subr.mxu0 0.0
          %1103 = vmatpush2.msra.mxu0 0.0
          %1104 = vmatprep.subr.mxu0 0.0
          %1105 = vmatpush2.msra.mxu0 0.0
          %1106 = vmatprep.subr.mxu0 0.0
          %1107 = vmatpush2.msra.mxu0 0.0
          %1108 = vmatprep.subr.mxu0 0.0
          %1109 = vmatpush2.msra.mxu0 0.0
          %1110 = vmatprep.subr.mxu0 0.0
          %1111 = vmatpush2.msra.mxu0 0.0
          %1112 = vmatprep.subr.mxu0 0.0
          %1113 = vmatpush2.msra.mxu0 0.0
          %1114 = vmatprep.subr.mxu0 0.0
          %1115 = vmatpush2.msra.mxu0 0.0
          %1116 = vmatprep.subr.mxu0 0.0
          %1117 = vmatpush2.msra.mxu0 0.0
          %1118 = vmatprep.subr.mxu0 0.0
          %1119 = vmatpush2.msra.mxu0 0.0
          %1120 = vmatprep.subr.mxu0 0.0
          %1121 = vmatpush2.msra.mxu0 0.0
          %1122 = vmatprep.subr.mxu0 0.0
          %1123 = vmatpush2.msra.mxu0 0.0
          %1124 = vmatprep.subr.mxu0 0.0
          %1125 = vmatpush2.msra.mxu0 0.0
          %1126 = vmatprep.mubr.f32.mxu0 0.0
          %1127 = vmatmul.mubr.f32.gmra.mxu0 %v1060
          %v1128 = vpop.f32.mrf.mxu0
          %v1129 = vadd.f32 %v1057, %v1128
          %v1130 = vpop.f32.mrf.mxu0
          %1131 = vdwg.mxu0
          %1132 = vst [vmem:[#allocation13] sm:$0xff] %v1129
        $region68: #{tpu_custom_call.1} parent=43 // pred_fallthru
          _
        // Predicated region
        $region69: #{tpu_custom_call.1} parent=43 // pred_check
          %p1133 = pneg %p186
        $region70: #{tpu_custom_call.1} parent=43 // pred_check_branch
          %1135 = sbr.rel (%p1133) target = $region72
        $region71: #{tpu_custom_call.1} parent=43 // pred_region
          %s1137 = ssub.s32 128, 128
          %1138 = vsyncadd [#allocation7], %s1137
          %s1139 = smul.addr %s27, 128
          %s1140 = scalar_lea.hbm %s6, %s1139
          %s1142 = sshll.u32 [#allocation13], 4
          %s1143 = int_to_ptr.vmem [resolvable:$true] %s1142
          %1145 = dma.vmem_to_hbm [thread:$0]  %s1143, 128, %s1140, [#allocation7]
        $region72: #{tpu_custom_call.1} parent=43 // pred_fallthru
          _
        // Predicated region
        $region73: #{tpu_custom_call.1} parent=43 // pred_check
          %p1146 = pneg %p186
        $region74: #{tpu_custom_call.1} parent=43 // pred_check_branch
          %1148 = sbr.rel (%p1146) target = $region76
        $region75: #{tpu_custom_call.1} parent=43 // pred_region
          %1149 = dma.done [#allocation7], 128
        $region76: #{tpu_custom_call.1} parent=43 // pred_fallthru
          _
      $region44: #{tpu_custom_call.1} parent=5 // pred_fallthru
        _
      %p1150 = scmp.le.s32.totalorder 2, %s18
      // Predicated region
      $region77: #{tpu_custom_call.1} parent=5 // pred_check
        %p1151 = pneg %p1150
      $region78: #{tpu_custom_call.1} parent=5 // pred_check_branch
        %1153 = sbr.rel (%p1151) target = $region80
      $region79: #{tpu_custom_call.1} parent=5 // pred_region
        %s1154 = ssub.s32 %s18, 2
      $region80: #{tpu_custom_call.1} parent=5 // pred_fallthru
        _
    $region6: #{tpu_custom_call.1} parent=1 // loop_footer
      %s22 = sadd.s32 1, %s18
    $region7: #{tpu_custom_call.1} parent=1 // loop_footer_branch
      %17 = sbr.rel target = $region3
    $region8: #{tpu_custom_call.1} parent=1 // loop_exit
      _
    %1155 = vsyncpa [#allocation6], 1
    %s1156 = scalar_lea.sflag [#allocation6], 1
    %1157 = vsyncpa %s1156, 1
    %1158 = vsyncpa [#allocation9], 1
    %1159 = vsyncpa [#allocation12], 1
    %1160 = vsyncpa [#allocation7], 1
    %s1161 = scalar_lea.sflag [#allocation7], 1
    %1162 = vsyncpa %s1161, 1

</llo_original>
